<compile_context>
chip_gen: v6e
topology: v6e:2x2x1
jax: 0.10.0
libtpu: 0.0.40
codegen_flags: <defaults>
</compile_context>

<pallas_src>
import functools
import numpy as np

import jax
import jax.numpy as jnp
from jax.experimental import pallas as pl
from jax.experimental.pallas import tpu as pltpu


# ----------------------------- tiling helpers --------------------------------

def _round_up(x, m):
    return ((x + m - 1) // m) * m


def _choose_tm(M, max_tm=1024):
    """Largest row tile <= max_tm (multiple of 8).  When the whole problem would
    fit in one tile we still split it in two so multi-TensorCore chips (v7x) get
    >= 2 'parallel' grid steps.  Rows are zero-padded to a multiple of the tile
    (never a single giant full-array block)."""
    if M <= 16:
        return _round_up(M, 8)
    n_tiles = max(2, -(-M // max_tm))
    return _round_up(-(-M // n_tiles), 8)


# ----------------------------- in-kernel helpers -----------------------------

def _recip(x):
    # EUP approximate reciprocal (frees the VALU divide) + one Newton step to
    # recover ~f32 accuracy:  r <- r * (2 - x * r).
    r = pl.reciprocal(x, approx=True)
    return r * (2.0 - x * r)


def _erf_approx(x):
    # Abramowitz & Stegun 7.1.26 rational approximation (|err| <= 1.5e-7),
    # built only from ops guaranteed to lower in Mosaic.
    a1, a2, a3, a4, a5 = 0.254829592, -0.284496736, 1.421413741, -1.453152027, 1.061405429
    p = 0.3275911
    s = jnp.where(x >= 0.0, 1.0, -1.0)
    ax = jnp.abs(x)
    t = _recip(1.0 + p * ax)
    poly = ((((a5 * t + a4) * t + a3) * t + a2) * t + a1) * t
    return s * (1.0 - poly * jnp.exp(-ax * ax))


def _gelu(x):
    # exact (erf-based) GELU, matching torch.nn.functional.gelu default
    return 0.5 * x * (1.0 + _erf_approx(x * 0.7071067811865476))


# ----------------------------- Pallas kernels --------------------------------

def _linear_kernel(x_ref, w_ref, b_ref, o_ref, *, act):
    y = jnp.dot(x_ref[...], w_ref[...], preferred_element_type=jnp.float32) + b_ref[...]
    if act == "gelu":
        y = _gelu(y)
    o_ref[...] = y


def _linear_add_kernel(x_ref, w_ref, b_ref, a_ref, o_ref, *, act):
    y = (jnp.dot(x_ref[...], w_ref[...], preferred_element_type=jnp.float32)
         + b_ref[...] + a_ref[...])
    if act == "gelu":
        y = _gelu(y)
    o_ref[...] = y


def pallas_linear(x, w, b, add=None, act="none"):
    """y = act(x @ w + b [+ add]);  x: [M,K], w: [K,N], b: [N], add: [M,N]."""
    M, K = x.shape
    N = w.shape[1]
    TM = _choose_tm(M)
    Mp = _round_up(M, TM)
    x = x.astype(jnp.float32)
    if Mp != M:
        x = jnp.pad(x, ((0, Mp - M), (0, 0)))
    grid = (Mp // TM,)
    b2 = b.reshape(1, N).astype(jnp.float32)

    x_spec = pl.BlockSpec((TM, K), lambda i: (i, 0))
    w_spec = pl.BlockSpec((K, N), lambda i: (0, 0))
    b_spec = pl.BlockSpec((1, N), lambda i: (0, 0))
    o_spec = pl.BlockSpec((TM, N), lambda i: (i, 0))
    out_shape = jax.ShapeDtypeStruct((Mp, N), jnp.float32)
    cparams = pltpu.CompilerParams(dimension_semantics=("parallel",))

    if add is None:
        out = pl.pallas_call(
            functools.partial(_linear_kernel, act=act),
            out_shape=out_shape, grid=grid,
            in_specs=[x_spec, w_spec, b_spec], out_specs=o_spec,
            compiler_params=cparams,
        )(x, w.astype(jnp.float32), b2)
    else:
        a = add.astype(jnp.float32)
        if Mp != M:
            a = jnp.pad(a, ((0, Mp - M), (0, 0)))
        a_spec = pl.BlockSpec((TM, N), lambda i: (i, 0))
        out = pl.pallas_call(
            functools.partial(_linear_add_kernel, act=act),
            out_shape=out_shape, grid=grid,
            in_specs=[x_spec, w_spec, b_spec, a_spec], out_specs=o_spec,
            compiler_params=cparams,
        )(x, w.astype(jnp.float32), b2, a)
    return out[:M] if Mp != M else out


def _fc_tail_kernel(x_ref, w1_ref, b1_ref, w2_ref, b2_ref, w3_ref, b3_ref, o_ref):
    h = _gelu(jnp.dot(x_ref[...], w1_ref[...], preferred_element_type=jnp.float32)
              + b1_ref[...])
    h = _gelu(jnp.dot(h, w2_ref[...], preferred_element_type=jnp.float32) + b2_ref[...])
    o_ref[...] = jnp.dot(h, w3_ref[...], preferred_element_type=jnp.float32) + b3_ref[...]


def pallas_fc_tail(x, w1, b1, w2, b2, w3, b3):
    """Fused fc1 -> GELU -> fc2 -> GELU -> fc3 on a VMEM-resident row tile."""
    M, K = x.shape
    N1, N2, N3 = w1.shape[1], w2.shape[1], w3.shape[1]
    TM = _choose_tm(M)
    Mp = _round_up(M, TM)
    x = x.astype(jnp.float32)
    if Mp != M:
        x = jnp.pad(x, ((0, Mp - M), (0, 0)))
    grid = (Mp // TM,)

    def full(shape):
        return pl.BlockSpec(shape, lambda i: tuple(0 for _ in shape))

    out = pl.pallas_call(
        _fc_tail_kernel,
        out_shape=jax.ShapeDtypeStruct((Mp, N3), jnp.float32),
        grid=grid,
        in_specs=[pl.BlockSpec((TM, K), lambda i: (i, 0)),
                  full((K, N1)), full((1, N1)),
                  full((N1, N2)), full((1, N2)),
                  full((N2, N3)), full((1, N3))],
        out_specs=pl.BlockSpec((TM, N3), lambda i: (i, 0)),
        compiler_params=pltpu.CompilerParams(dimension_semantics=("parallel",)),
    )(x,
      w1.astype(jnp.float32), b1.reshape(1, N1).astype(jnp.float32),
      w2.astype(jnp.float32), b2.reshape(1, N2).astype(jnp.float32),
      w3.astype(jnp.float32), b3.reshape(1, N3).astype(jnp.float32))
    return out[:M] if Mp != M else out


def _spectral_mix_kernel(cr_ref, ci_ref, wpr_ref, wpi_ref, wc_ref, o_ref, *, P, C):
    # cr/ci  : (1, 1, P, M12, C)   FFT coefficients (one {low,high} slot, one batch elem)
    # wpr/wpi: (1, P, P, M12, C)   pipe-mix weights pre-broadcast along C (lane dense)
    # wc     : (1, 2C, 2C)         block-complex channel weights [[Wr, Wi], [-Wi, Wr]]
    # o      : (1, 1, P, M12, 2C)  [real | imag] of the mixed coefficients
    wc_top = wc_ref[0, :C, :]       # (C, 2C)  rows multiplied by the real part
    wc_bot = wc_ref[0, C:, :]       # (C, 2C)  rows multiplied by the imag part
    for o in range(P):
        # pipe mix:  y[o, m, c] = sum_z x[z, m, c] * Wp[z, o, m]   (complex)
        acc_r = cr_ref[0, 0, 0] * wpr_ref[0, 0, o] - ci_ref[0, 0, 0] * wpi_ref[0, 0, o]
        acc_i = cr_ref[0, 0, 0] * wpi_ref[0, 0, o] + ci_ref[0, 0, 0] * wpr_ref[0, 0, o]
        for z in range(1, P):
            xr, xi = cr_ref[0, 0, z], ci_ref[0, 0, z]
            wr, wi = wpr_ref[0, z, o], wpi_ref[0, z, o]
            acc_r = acc_r + xr * wr - xi * wi
            acc_i = acc_i + xr * wi + xi * wr
        # channel mix (block-complex):  [yr | yi] @ [[Wr,Wi],[-Wi,Wr]]
        o_ref[0, 0, o] = (jnp.dot(acc_r, wc_top, preferred_element_type=jnp.float32)
                          + jnp.dot(acc_i, wc_bot, preferred_element_type=jnp.float32))


def pallas_spectral_mix(crs, cis, wprs, wpis, wcs):
    """Fused pipe-mix ('bizxy,zoxy->bioxy') + channel-mix ('bizxy,io->bozxy') for
    both the low and high frequency quadrants in a single pallas_call.
      crs/cis  : (2, B, P, M12, C)
      wprs/wpis: (2, P, P, M12, C)
      wcs      : (2, 2C, 2C)
    Returns (2, B, P, M12, 2C) with [real | imag] concatenated on the last dim."""
    _, B, P, M12, C = crs.shape
    coef_spec = pl.BlockSpec((1, 1, P, M12, C), lambda s, b: (s, b, 0, 0, 0))
    wp_spec = pl.BlockSpec((1, P, P, M12, C), lambda s, b: (s, 0, 0, 0, 0))
    wc_spec = pl.BlockSpec((1, 2 * C, 2 * C), lambda s, b: (s, 0, 0))
    out_spec = pl.BlockSpec((1, 1, P, M12, 2 * C), lambda s, b: (s, b, 0, 0, 0))
    return pl.pallas_call(
        functools.partial(_spectral_mix_kernel, P=P, C=C),
        out_shape=jax.ShapeDtypeStruct((2, B, P, M12, 2 * C), jnp.float32),
        grid=(2, B),
        in_specs=[coef_spec, coef_spec, wp_spec, wp_spec, wc_spec],
        out_specs=out_spec,
        compiler_params=pltpu.CompilerParams(dimension_semantics=("parallel", "parallel")),
    )(crs, cis, wprs, wpis, wcs)


# ----------------------------- model forward ---------------------------------

def _lin(x2d, w, b, add=None, act="none", use_pallas=True):
    if use_pallas:
        return pallas_linear(x2d, w, b, add=add, act=act)
    y = jnp.dot(x2d, w, precision="highest") + b
    if add is not None:
        y = y + add
    if act == "gelu":
        y = jax.nn.gelu(y, approximate=False)
    return y


def spectral_conv_m35(x_pipes, lw, m1, m2, use_pallas):
    """Graph_SpectralConv2d.forward with method == 35 (channels-last layout)."""
    B, H, _, C = x_pipes[0].shape
    P = len(x_pipes)
    M12 = m1 * m2

    # TODO(synk): 2-D real FFT (torch.fft.rfftn / irfftn) has no Pallas TPU primitive;
    #             it stays in plain JAX (jnp.fft).
    fts = [jnp.fft.rfftn(xp, axes=(1, 2)) for xp in x_pipes]          # [B,H,Wf,C] c64
    low = jnp.stack([ft[:, :m1, :m2, :] for ft in fts], axis=1)       # [B,P,m1,m2,C]
    high = jnp.stack([ft[:, -m1:, :m2, :] for ft in fts], axis=1)     # [B,P,m1,m2,C]

    if use_pallas:
        def coef_ri(c):
            return (jnp.real(c).reshape(B, P, M12, C).astype(jnp.float32),
                    jnp.imag(c).reshape(B, P, M12, C).astype(jnp.float32))

        def pipe_w(w):   # (P,P,m1,m2) complex -> lane-dense (P,P,M12,C) real/imag
            wr = jnp.real(w).reshape(P, P, M12, 1).astype(jnp.float32)
            wi = jnp.imag(w).reshape(P, P, M12, 1).astype(jnp.float32)
            return (jnp.broadcast_to(wr, (P, P, M12, C)),
                    jnp.broadcast_to(wi, (P, P, M12, C)))

        def chan_w(w):   # (C,C) complex -> (2C,2C) block-complex [[Wr,Wi],[-Wi,Wr]]
            wr = jnp.real(w).astype(jnp.float32)
            wi = jnp.imag(w).astype(jnp.float32)
            return jnp.concatenate(
                [jnp.concatenate([wr, wi], axis=1),
                 jnp.concatenate([-wi, wr], axis=1)], axis=0)

        crL, ciL = coef_ri(low)
        crH, ciH = coef_ri(high)
        wprL, wpiL = pipe_w(lw["w10"])
        wprH, wpiH = pipe_w(lw["w11"])
        zout = pallas_spectral_mix(
            jnp.stack([crL, crH]), jnp.stack([ciL, ciH]),
            jnp.stack([wprL, wprH]), jnp.stack([wpiL, wpiH]),
            jnp.stack([chan_w(lw["w12"]), chan_w(lw["w13"])]))
        zr = zout[..., :C].reshape(2, B, P, m1, m2, C)
        zi = zout[..., C:].reshape(2, B, P, m1, m2, C)
        out_low = zr[0] + 1j * zi[0]
        out_high = zr[1] + 1j * zi[1]
    else:
        def mix_ref(coef, w_pipe, w_chan):
            cr = jnp.real(coef).reshape(B, P, M12, C).astype(jnp.float32)
            ci = jnp.imag(coef).reshape(B, P, M12, C).astype(jnp.float32)
            wpr = jnp.real(w_pipe).reshape(P, P, M12).astype(jnp.float32)
            wpi = jnp.imag(w_pipe).reshape(P, P, M12).astype(jnp.float32)
            yr = (jnp.einsum("bzmc,zom->bomc", cr, wpr, precision="highest")
                  - jnp.einsum("bzmc,zom->bomc", ci, wpi, precision="highest"))
            yi = (jnp.einsum("bzmc,zom->bomc", cr, wpi, precision="highest")
                  + jnp.einsum("bzmc,zom->bomc", ci, wpr, precision="highest"))
            yr2 = yr.reshape(B * P * M12, C)
            yi2 = yi.reshape(B * P * M12, C)
            wcr = jnp.real(w_chan).astype(jnp.float32)
            wci = jnp.imag(w_chan).astype(jnp.float32)
            zr_ = (jnp.dot(yr2, wcr, precision="highest")
                   - jnp.dot(yi2, wci, precision="highest"))
            zi_ = (jnp.dot(yr2, wci, precision="highest")
                   + jnp.dot(yi2, wcr, precision="highest"))
            return (zr_ + 1j * zi_).reshape(B, P, m1, m2, C)

        out_low = mix_ref(low, lw["w10"], lw["w12"])
        out_high = mix_ref(high, lw["w11"], lw["w13"])

    outs = []
    for p in range(P):
        Wp = x_pipes[p].shape[2]
        Wf = Wp // 2 + 1
        full = jnp.zeros((B, H, Wf, C), dtype=jnp.complex64)
        full = full.at[:, :m1, :m2, :].set(out_low[:, p])
        full = full.at[:, -m1:, :m2, :].set(out_high[:, p])
        outs.append(jnp.fft.irfftn(full, s=(H, Wp), axes=(1, 2)).astype(jnp.float32))
    return outs


def gno2d_forward(params, x_list, modes1, modes2, use_pallas=True):
    original_sizes = [t.shape[2] for t in x_list]
    splits = np.cumsum(original_sizes)[:-1].tolist()

    x_cat = jnp.concatenate(x_list, axis=2)                 # [B, H, Wtot, in_dim]
    B, H, Wtot, Din = x_cat.shape
    C0 = params["fc0_w"].shape[1]

    # fc0 (no activation)
    x = _lin(x_cat.reshape(-1, Din), params["fc0_w"], params["fc0_b"],
             use_pallas=use_pallas).reshape(B, H, Wtot, C0)
    # pad_ratio = [0,0,0]  =>  add_padding2 / remove_padding2 are no-ops.

    n_layers = len(params["layers"])
    for li, lw in enumerate(params["layers"]):
        m1, m2 = modes1[li], modes2[li]
        x_pipes = jnp.split(x, splits, axis=2)
        spec_pipes = spectral_conv_m35(x_pipes, lw, m1, m2, use_pallas)
        spec_cat = jnp.concatenate(spec_pipes, axis=2)       # [B, H, Wtot, Cout]
        Cin = x.shape[-1]
        Cout = lw["conv_w"].shape[1]
        # 1x1 conv "w" branch is shared across pipes -> one fused call over all pipes:
        #   act(conv(x) + spectral_residual)
        x = _lin(x.reshape(-1, Cin), lw["conv_w"], lw["conv_b"],
                 add=spec_cat.reshape(-1, Cout),
                 act=("none" if li == n_layers - 1 else "gelu"),
                 use_pallas=use_pallas).reshape(B, H, Wtot, Cout)

    C = x.shape[-1]
    if use_pallas:
        h = pallas_fc_tail(x.reshape(-1, C),
                           params["fc1_w"], params["fc1_b"],
                           params["fc2_w"], params["fc2_b"],
                           params["fc3_w"], params["fc3_b"])
    else:
        h = _lin(x.reshape(-1, C), params["fc1_w"], params["fc1_b"], act="gelu",
                 use_pallas=False)
        h = _lin(h, params["fc2_w"], params["fc2_b"], act="gelu", use_pallas=False)
        h = _lin(h, params["fc3_w"], params["fc3_b"], act="none", use_pallas=False)
    out = h.reshape(B, H, Wtot, -1)
    return jnp.split(out, splits, axis=2)                   # list of [B, H, W_i, out_dim]


# ----------------------------- parameter init --------------------------------

def init_params(key, in_dim, layers, modes1, modes2, fc_dim, out_dim, n_pipe):
    keys = iter(jax.random.split(key, 64))

    def lin_init(k, fan_in, fan_out):
        bound = 1.0 / np.sqrt(fan_in)
        kw, kb = jax.random.split(k)
        w = jax.random.uniform(kw, (fan_in, fan_out), jnp.float32, -bound, bound)
        b = jax.random.uniform(kb, (fan_out,), jnp.float32, -bound, bound)
        return w, b

    params = {}
    params["fc0_w"], params["fc0_b"] = lin_init(next(keys), in_dim, layers[0])

    layer_params = []
    for (c_in, c_out, m1, m2) in zip(layers, layers[1:], modes1, modes2):
        scale = 1.0 / (c_in * c_out)

        def cplx(k, shape):
            kr, ki = jax.random.split(k)
            return (scale * jax.random.uniform(kr, shape, jnp.float32)
                    + 1j * scale * jax.random.uniform(ki, shape, jnp.float32)
                    ).astype(jnp.complex64)

        lw = {
            "w10": cplx(next(keys), (n_pipe, n_pipe, m1, m2)),
            "w11": cplx(next(keys), (n_pipe, n_pipe, m1, m2)),
            "w12": cplx(next(keys), (c_out, c_out)),
            "w13": cplx(next(keys), (c_out, c_out)),
        }
        lw["conv_w"], lw["conv_b"] = lin_init(next(keys), c_in, c_out)  # 1x1 Conv2d
        layer_params.append(lw)
    params["layers"] = layer_params

    params["fc1_w"], params["fc1_b"] = lin_init(next(keys), layers[-1], fc_dim)
    params["fc2_w"], params["fc2_b"] = lin_init(next(keys), fc_dim, layers[-1])
    params["fc3_w"], params["fc3_b"] = lin_init(next(keys), layers[-1], out_dim)
    return params


# ----------------------------------- main -------------------------------------

if __name__ == "__main__":
    B, H = 2, 16
    widths = [12, 12]                  # per-pipe spatial width  (num_pipe = 2)
    in_dim, out_dim, fc_dim = 4, 2, 32
    layers = [16, 16, 16]              # -> 2 spectral layers, channel width 16
    modes1 = [4, 4]
    modes2 = [4, 4]
    n_pipe = len(widths)

    key = jax.random.PRNGKey(0)
    kx, kp = jax.random.split(key)
    xkeys = jax.random.split(kx, n_pipe)
    x_list = [jax.random.normal(xkeys[i], (B, H, widths[i], in_dim), jnp.float32)
              for i in range(n_pipe)]

    params = init_params(kp, in_dim, layers, modes1, modes2, fc_dim, out_dim, n_pipe)

    out = gno2d_forward(params, x_list, modes1, modes2, use_pallas=True)
    out = jax.block_until_ready(out)

    # pure-JAX reference (same math, jnp matmuls) for a sanity check
    ref = gno2d_forward(params, x_list, modes1, modes2, use_pallas=False)
    ref = jax.block_until_ready(ref)

    ok = True
    max_diff = 0.0
    for o, r in zip(out, ref):
        o_np, r_np = np.asarray(o), np.asarray(r)
        max_diff = max(max_diff, float(np.max(np.abs(o_np - r_np))))
        if not (np.isfinite(o_np).all() and np.allclose(o_np, r_np, rtol=2e-3, atol=2e-3)):
            ok = False

    if ok:
        print("KERNEL_OK")
    else:
        print(f"MISMATCH max_abs_diff={max_diff}")
</pallas_src>

<mosaic_0001>
module attributes {stable_mosaic.version = 11 : i64} {
  func.func @_linear_kernel(%arg0: i32, %arg1: memref<384x4xf32, #tpu.memory_space<vmem>>, %arg2: memref<4x16xf32, #tpu.memory_space<vmem>>, %arg3: memref<1x16xf32, #tpu.memory_space<vmem>>, %arg4: memref<384x16xf32, #tpu.memory_space<vmem>>) attributes {dimension_semantics = [#tpu.dimension_semantics<parallel>], iteration_bounds = array<i64: 2>, scalar_prefetch = 0 : i64, scratch_operands = 0 : i64, tpu.core_type = #tpu.core_type<tc>, window_params = [{transform_indices = @transform_0, window_bounds = array<i64: 384, 4>}, {pipeline_mode = #tpu.pipeline_mode<synchronous>, transform_indices = @transform_1, window_bounds = array<i64: 4, 16>}, {pipeline_mode = #tpu.pipeline_mode<synchronous>, transform_indices = @transform_2, window_bounds = array<i64: 1, 16>}, {transform_indices = @transform_3, window_bounds = array<i64: 384, 16>}]} {
    %c0 = arith.constant 0 : index
    %c0_0 = arith.constant 0 : index
    %0 = vector.load %arg1[%c0, %c0_0] : memref<384x4xf32, #tpu.memory_space<vmem>>, vector<384x4xf32>
    %c0_1 = arith.constant 0 : index
    %c0_2 = arith.constant 0 : index
    %1 = vector.load %arg2[%c0_1, %c0_2] : memref<4x16xf32, #tpu.memory_space<vmem>>, vector<4x16xf32>
    %cst = arith.constant dense<0.000000e+00> : vector<384x16xf32>
    %2 = tpu.matmul %0, %1, %cst {dimension_numbers = #tpu.dot_dimension_numbers<[1], [0], [0], [1], [0, 0, 1, 1], [], []>} : vector<384x4xf32>, vector<4x16xf32>, vector<384x16xf32> -> vector<384x16xf32>
    %c0_3 = arith.constant 0 : index
    %c0_4 = arith.constant 0 : index
    %3 = vector.load %arg3[%c0_3, %c0_4] : memref<1x16xf32, #tpu.memory_space<vmem>>, vector<1x16xf32>
    %4 = vector.broadcast %3 : vector<1x16xf32> to vector<384x16xf32>
    %5 = arith.addf %2, %4 : vector<384x16xf32>
    %c0_5 = arith.constant 0 : index
    %c0_6 = arith.constant 0 : index
    %6 = vector.load %arg4[%c0_5, %c0_6] : memref<384x16xf32, #tpu.memory_space<vmem>>, vector<384x16xf32>
    tpu.vector_store %arg4[%c0_5, %c0_6], %5 {strides = array<i32>} : memref<384x16xf32, #tpu.memory_space<vmem>>, vector<384x16xf32>,
    return
  }
  func.func @transform_0(%arg0: i32) -> (i32, i32) {
    %c0_i32 = arith.constant 0 : i32
    %c0_i32_0 = arith.constant 0 : i32
    return %arg0, %c0_i32 : i32, i32
  }
  func.func @transform_1(%arg0: i32) -> (i32, i32) {
    %c0_i32 = arith.constant 0 : i32
    %c0_i32_0 = arith.constant 0 : i32
    %c0_i32_1 = arith.constant 0 : i32
    return %c0_i32, %c0_i32_0 : i32, i32
  }
  func.func @transform_2(%arg0: i32) -> (i32, i32) {
    %c0_i32 = arith.constant 0 : i32
    %c0_i32_0 = arith.constant 0 : i32
    %c0_i32_1 = arith.constant 0 : i32
    return %c0_i32, %c0_i32_0 : i32, i32
  }
  func.func @transform_3(%arg0: i32) -> (i32, i32) {
    %c0_i32 = arith.constant 0 : i32
    %c0_i32_0 = arith.constant 0 : i32
    return %arg0, %c0_i32 : i32, i32
  }
}

</mosaic_0001>

<llo_original>
// kernel: tpu_custom_call.1
$region0: #{tpu_custom_call.1}
  #allocation0 [shape = 'u32[]', space=smem, size = 0x4, offset = 0x4, fixed_abs, tag = 'smem constant byte address 0x4 - core index']
  #allocation1 [shape = 'u32[144,128]{1,0:T(1,128)}', space=vmem, size = 0x12000, scoped, tag = 'internal scratch']
  %s0 = inlined_call_operand.vmem [shape: f32[768,4], index: 0, kind: input, shape index: {}]
  %s1 = inlined_call_operand.vmem [shape: f32[4,16], index: 1, kind: input, shape index: {}]
  %s2 = inlined_call_operand.vmem [shape: f32[1,16], index: 2, kind: input, shape index: {}]
  %s3 = inlined_call_operand.vmem [shape: f32[768,16], index: 3, kind: output, shape index: {}]
  %s4 = sld [smem:[#allocation0]]
  $region45: #{tpu_custom_call.1} parent=0
    _
  %s6 = ssub.s32 1, %s4
  %s7 = scalar_select 0, %s6, %s4
  loop: start=0, step=1, limit=4
  $region2: #{tpu_custom_call.1} parent=0 // loop_pre_header
    _
  $region3: #{tpu_custom_call.1} parent=0 // loop_header
    %s9 = sphi 0, %s13
    %p10 = scmp.ge.s32.totalorder %s9, 4
    %s19 = sphi 0, %s21
    %s22 = sphi 0, %s19
    %s23 = sphi 0, %s22
    %s39 = sphi 0, %s23
    %s43 = sphi 0, %s43
    %s45 = sphi 0, %s43
    %s46 = sphi 0, %s45
    %s60 = sphi 0, %s46
    %s64 = sphi 0, %s64
    %s66 = sphi 0, %s64
    %s67 = sphi 0, %s66
    %s81 = sphi 0, %s67
    %s87 = sphi 0, %s89
    %s90 = sphi 0, %s87
    %s91 = sphi 0, %s90
    %s107 = sphi 0, %s91
  $region4: #{tpu_custom_call.1} parent=0 // loop_header_branch
    %12 = sbr.rel (%p10) target = $region8
  $region5: #{tpu_custom_call.1} parent=0 // loop_body
    %s14 = ssub.s32 %s9, 1
    %s15 = ssub.s32 %s9, 2
    %s16 = sadd.s32 %s9, 1
    %s17 = ssub.s32 %s9, %s16
    %p18 = scmp.eq.s32.totalorder %s17, 0
    %s20 = sadd.s32 %s19, 1
    %s21 = scalar_select %p18, %s19, %s20
    %p24 = pneg %p18
    %p25 = scmp.eq.s32.totalorder %s9, 1
    %p26 = por %p24, %p25
    %p27 = scmp.ne.s32.totalorder %s19, %s22
    %p28 = scmp.eq.s32.totalorder %s9, 0
    %p29 = por %p27, %p28
    %p30 = scmp.ne.s32.totalorder %s19, %s22
    %p31 = scmp.eq.s32.totalorder %s14, 1
    %p32 = por %p30, %p31
    %p33 = scmp.ne.s32.totalorder %s22, %s23
    %p34 = scmp.eq.s32.totalorder %s14, 0
    %p35 = por %p33, %p34
    %p36 = scmp.ne.s32.totalorder %s22, %s23
    %p37 = scmp.eq.s32.totalorder %s15, 1
    %p38 = por %p36, %p37
    %p40 = scmp.ne.s32.totalorder %s23, %s39
    %p41 = scmp.eq.s32.totalorder %s15, 0
    %p42 = por %p40, %p41
    %s44 = sadd.s32 %s43, 1
    %p47 = scmp.eq.s32.totalorder %s9, 1
    %p48 = scmp.ne.s32.totalorder %s43, %s45
    %p49 = scmp.eq.s32.totalorder %s9, 0
    %p50 = por %p48, %p49
    %p51 = scmp.ne.s32.totalorder %s43, %s45
    %p52 = scmp.eq.s32.totalorder %s14, 1
    %p53 = por %p51, %p52
    %p54 = scmp.ne.s32.totalorder %s45, %s46
    %p55 = scmp.eq.s32.totalorder %s14, 0
    %p56 = por %p54, %p55
    %p57 = scmp.ne.s32.totalorder %s45, %s46
    %p58 = scmp.eq.s32.totalorder %s15, 1
    %p59 = por %p57, %p58
    %p61 = scmp.ne.s32.totalorder %s46, %s60
    %p62 = scmp.eq.s32.totalorder %s15, 0
    %p63 = por %p61, %p62
    %s65 = sadd.s32 %s64, 1
    %p68 = scmp.eq.s32.totalorder %s9, 1
    %p69 = scmp.ne.s32.totalorder %s64, %s66
    %p70 = scmp.eq.s32.totalorder %s9, 0
    %p71 = por %p69, %p70
    %p72 = scmp.ne.s32.totalorder %s64, %s66
    %p73 = scmp.eq.s32.totalorder %s14, 1
    %p74 = por %p72, %p73
    %p75 = scmp.ne.s32.totalorder %s66, %s67
    %p76 = scmp.eq.s32.totalorder %s14, 0
    %p77 = por %p75, %p76
    %p78 = scmp.ne.s32.totalorder %s66, %s67
    %p79 = scmp.eq.s32.totalorder %s15, 1
    %p80 = por %p78, %p79
    %p82 = scmp.ne.s32.totalorder %s67, %s81
    %p83 = scmp.eq.s32.totalorder %s15, 0
    %p84 = por %p82, %p83
    %s85 = ssub.s32 %s9, %s16
    %p86 = scmp.eq.s32.totalorder %s85, 0
    %s88 = sadd.s32 %s87, 1
    %s89 = scalar_select %p86, %s87, %s88
    %p92 = pneg %p86
    %p93 = scmp.eq.s32.totalorder %s9, 1
    %p94 = por %p92, %p93
    %p95 = scmp.ne.s32.totalorder %s87, %s90
    %p96 = scmp.eq.s32.totalorder %s9, 0
    %p97 = por %p95, %p96
    %p98 = scmp.ne.s32.totalorder %s87, %s90
    %p99 = scmp.eq.s32.totalorder %s14, 1
    %p100 = por %p98, %p99
    %p101 = scmp.ne.s32.totalorder %s90, %s91
    %p102 = scmp.eq.s32.totalorder %s14, 0
    %p103 = por %p101, %p102
    %p104 = scmp.ne.s32.totalorder %s90, %s91
    %p105 = scmp.eq.s32.totalorder %s15, 1
    %p106 = por %p104, %p105
    %p108 = scmp.ne.s32.totalorder %s91, %s107
    %p109 = scmp.eq.s32.totalorder %s15, 0
    %p110 = por %p108, %p109
    %p111 = scmp.le.s32.totalorder 1, %s9
    %p112 = scmp.lt.s32.totalorder %s9, 3
    %p113 = pnand %p111, %p112
    %p114 = pneg %p113
    // Predicated region
    $region9: #{tpu_custom_call.1} parent=5 // pred_check
      _
    $region10: #{tpu_custom_call.1} parent=5 // pred_check_branch
      %116 = sbr.rel (%p113) target = $region12
    $region11: #{tpu_custom_call.1} parent=5 // pred_region
      %s117 = ssub.s32 %s9, 1
      // Predicated region
      $region13: #{tpu_custom_call.1} parent=11 // pred_check
        %p118 = pneg %p56
      $region14: #{tpu_custom_call.1} parent=11 // pred_check_branch
        %120 = sbr.rel (%p118) target = $region16
      $region15: #{tpu_custom_call.1} parent=11 // pred_region
        _
      $region16: #{tpu_custom_call.1} parent=11 // pred_fallthru
        _
      // Predicated region
      $region17: #{tpu_custom_call.1} parent=11 // pred_check
        %p121 = pneg %p77
      $region18: #{tpu_custom_call.1} parent=11 // pred_check_branch
        %123 = sbr.rel (%p121) target = $region20
      $region19: #{tpu_custom_call.1} parent=11 // pred_region
        _
      $region20: #{tpu_custom_call.1} parent=11 // pred_fallthru
        _
    $region12: #{tpu_custom_call.1} parent=5 // pred_fallthru
      _
    %p124 = scmp.lt.s32.totalorder %s9, 2
    // Predicated region
    $region21: #{tpu_custom_call.1} parent=5 // pred_check
      %p125 = pneg %p124
    $region22: #{tpu_custom_call.1} parent=5 // pred_check_branch
      %127 = sbr.rel (%p125) target = $region24
    $region23: #{tpu_custom_call.1} parent=5 // pred_region
      // Predicated region
      $region25: #{tpu_custom_call.1} parent=23 // pred_check
        %p128 = pneg %p29
      $region26: #{tpu_custom_call.1} parent=23 // pred_check_branch
        %130 = sbr.rel (%p128) target = $region28
      $region27: #{tpu_custom_call.1} parent=23 // pred_region
        %s131 = smul.u32 48, %s9
        %p132 = scmp.lt.s32.totalorder %s131, 95
        %s133 = scalar_select %p132, %s131, 95
        %s134 = smul.addr %s133, 8
        %s135 = scalar_lea.vmem %s0, %s134
        %s136 = smul.u32 48, %s9
      $region28: #{tpu_custom_call.1} parent=23 // pred_fallthru
        _
    $region24: #{tpu_custom_call.1} parent=5 // pred_fallthru
      _
    %p137 = scmp.le.s32.totalorder 1, %s9
    %p138 = scmp.lt.s32.totalorder %s9, 3
    %p139 = pnand %p137, %p138
    %p140 = pneg %p139
    // Predicated region
    $region29: #{tpu_custom_call.1} parent=5 // pred_check
      _
    $region30: #{tpu_custom_call.1} parent=5 // pred_check_branch
      %142 = sbr.rel (%p139) target = $region32
    $region31: #{tpu_custom_call.1} parent=5 // pred_region
      %s143 = ssub.s32 %s9, 1
      %s144 = smul.u32 48, %s14
      %p145 = scmp.lt.s32.totalorder %s144, 95
      %s146 = scalar_select %p145, %s144, 95
      %s147 = smul.addr %s146, 8
      %s148 = scalar_lea.vmem %s0, %s147
      %p149 = pneg %p35
      %p150 = pneg %p32
      %p151 = pneg %p56
      %p152 = pneg %p53
      %p153 = pneg %p77
      %p154 = pneg %p74
      %p155 = pneg %p103
      %p156 = pneg %p100
      %s157 = smul.u32 48, %s14
      %p158 = scmp.lt.s32.totalorder %s157, 95
      %s159 = scalar_select %p158, %s157, 95
      %s160 = smul.addr %s159, 8
      %s161 = scalar_lea.vmem %s3, %s160
      %s162 = smul.u32 48, %s14
      %p163 = scmp.lt.s32.totalorder %s162, 95
      %s164 = scalar_select %p163, %s162, 95
      %s165 = smul.addr %s164, 8
      %s166 = scalar_lea.vmem %s0, %s165
      %s167 = smul.u32 48, %s14
      %s168 = smul.u32 48, %s14
      %p169 = scmp.lt.s32.totalorder %s168, 95
      %s170 = scalar_select %p169, %s168, 95
      %s171 = smul.addr %s170, 8
      %s172 = scalar_lea.vmem %s3, %s171
      %s173 = smul.u32 48, %s14
      %v174 = vld [vmem:[%s166] sm:$0xff]
      %v175 = vld [vmem:[%s166 + $0x8] sm:$0xff]
      %v176 = vld [vmem:[%s166 + $0x10] sm:$0xff]
      %v177 = vld [vmem:[%s166 + $0x18] sm:$0xff]
      %v178 = vld [vmem:[%s166 + $0x20] sm:$0xff]
      %v179 = vld [vmem:[%s166 + $0x28] sm:$0xff]
      %v180 = vld [vmem:[%s166 + $0x30] sm:$0xff]
      %v181 = vld [vmem:[%s166 + $0x38] sm:$0xff]
      %v182 = vld [vmem:[%s166 + $0x40] sm:$0xff]
      %v183 = vld [vmem:[%s166 + $0x48] sm:$0xff]
      %v184 = vld [vmem:[%s166 + $0x50] sm:$0xff]
      %v185 = vld [vmem:[%s166 + $0x58] sm:$0xff]
      %v186 = vld [vmem:[%s166 + $0x60] sm:$0xff]
      %v187 = vld [vmem:[%s166 + $0x68] sm:$0xff]
      %v188 = vld [vmem:[%s166 + $0x70] sm:$0xff]
      %v189 = vld [vmem:[%s166 + $0x78] sm:$0xff]
      %v190 = vld [vmem:[%s166 + $0x80] sm:$0xff]
      %v191 = vld [vmem:[%s166 + $0x88] sm:$0xff]
      %v192 = vld [vmem:[%s166 + $0x90] sm:$0xff]
      %v193 = vld [vmem:[%s166 + $0x98] sm:$0xff]
      %v194 = vld [vmem:[%s166 + $0xa0] sm:$0xff]
      %v195 = vld [vmem:[%s166 + $0xa8] sm:$0xff]
      %v196 = vld [vmem:[%s166 + $0xb0] sm:$0xff]
      %v197 = vld [vmem:[%s166 + $0xb8] sm:$0xff]
      %v198 = vld [vmem:[%s166 + $0xc0] sm:$0xff]
      %v199 = vld [vmem:[%s166 + $0xc8] sm:$0xff]
      %v200 = vld [vmem:[%s166 + $0xd0] sm:$0xff]
      %v201 = vld [vmem:[%s166 + $0xd8] sm:$0xff]
      %v202 = vld [vmem:[%s166 + $0xe0] sm:$0xff]
      %v203 = vld [vmem:[%s166 + $0xe8] sm:$0xff]
      %v204 = vld [vmem:[%s166 + $0xf0] sm:$0xff]
      %v205 = vld [vmem:[%s166 + $0xf8] sm:$0xff]
      %v206 = vld [vmem:[%s166 + $0x100] sm:$0xff]
      %v207 = vld [vmem:[%s166 + $0x108] sm:$0xff]
      %v208 = vld [vmem:[%s166 + $0x110] sm:$0xff]
      %v209 = vld [vmem:[%s166 + $0x118] sm:$0xff]
      %v210 = vld [vmem:[%s166 + $0x120] sm:$0xff]
      %v211 = vld [vmem:[%s166 + $0x128] sm:$0xff]
      %v212 = vld [vmem:[%s166 + $0x130] sm:$0xff]
      %v213 = vld [vmem:[%s166 + $0x138] sm:$0xff]
      %v214 = vld [vmem:[%s166 + $0x140] sm:$0xff]
      %v215 = vld [vmem:[%s166 + $0x148] sm:$0xff]
      %v216 = vld [vmem:[%s166 + $0x150] sm:$0xff]
      %v217 = vld [vmem:[%s166 + $0x158] sm:$0xff]
      %v218 = vld [vmem:[%s166 + $0x160] sm:$0xff]
      %v219 = vld [vmem:[%s166 + $0x168] sm:$0xff]
      %v220 = vld [vmem:[%s166 + $0x170] sm:$0xff]
      %v221 = vld [vmem:[%s166 + $0x178] sm:$0xff]
      %v222 = vld [vmem:[%s1] sm:$0xf]
      %v223 = vld [vmem:[%s2] sm:$0x1]
      %v225 = vlaneseq
      %v226 = vshrl.u32 %v225, 7
      %v227 = vsub.s32 0, %v226
      %v228 = vrot.slane %v223, %v227
      %vm230 = vcmask 31744
      %v232 = vsel %vm230, %v174, 0
      %v235 = vsel %vm230, %v175, 0
      %v238 = vsel %vm230, %v176, 0
      %v241 = vsel %vm230, %v177, 0
      %v244 = vsel %vm230, %v178, 0
      %v247 = vsel %vm230, %v179, 0
      %v250 = vsel %vm230, %v180, 0
      %v253 = vsel %vm230, %v181, 0
      %v256 = vsel %vm230, %v182, 0
      %v259 = vsel %vm230, %v183, 0
      %v262 = vsel %vm230, %v184, 0
      %v265 = vsel %vm230, %v185, 0
      %v268 = vsel %vm230, %v186, 0
      %v271 = vsel %vm230, %v187, 0
      %v274 = vsel %vm230, %v188, 0
      %v277 = vsel %vm230, %v189, 0
      %v280 = vsel %vm230, %v190, 0
      %v283 = vsel %vm230, %v191, 0
      %v286 = vsel %vm230, %v192, 0
      %v289 = vsel %vm230, %v193, 0
      %v292 = vsel %vm230, %v194, 0
      %v295 = vsel %vm230, %v195, 0
      %v298 = vsel %vm230, %v196, 0
      %v301 = vsel %vm230, %v197, 0
      %v304 = vsel %vm230, %v198, 0
      %v307 = vsel %vm230, %v199, 0
      %v310 = vsel %vm230, %v200, 0
      %v313 = vsel %vm230, %v201, 0
      %v316 = vsel %vm230, %v202, 0
      %v319 = vsel %vm230, %v203, 0
      %v322 = vsel %vm230, %v204, 0
      %v325 = vsel %vm230, %v205, 0
      %v328 = vsel %vm230, %v206, 0
      %v331 = vsel %vm230, %v207, 0
      %v334 = vsel %vm230, %v208, 0
      %v337 = vsel %vm230, %v209, 0
      %v340 = vsel %vm230, %v210, 0
      %v343 = vsel %vm230, %v211, 0
      %v346 = vsel %vm230, %v212, 0
      %v349 = vsel %vm230, %v213, 0
      %v352 = vsel %vm230, %v214, 0
      %v355 = vsel %vm230, %v215, 0
      %v358 = vsel %vm230, %v216, 0
      %v361 = vsel %vm230, %v217, 0
      %v364 = vsel %vm230, %v218, 0
      %v367 = vsel %vm230, %v219, 0
      %v370 = vsel %vm230, %v220, 0
      %v373 = vsel %vm230, %v221, 0
      %vm375 = vcmask 1043456
      %v377 = vsel %vm375, %v222, 0
      %379 = vmatprep.subr.mxu0 0.0
      %380 = vmatpush1.msra.mxu0 0.0
      %381 = vmatprep.subr.mxu0 0.0
      %382 = vmatpush1.msra.mxu0 0.0
      %383 = vmatprep.subr.mxu0 0.0
      %384 = vmatpush1.msra.mxu0 0.0
      %385 = vmatprep.subr.mxu0 0.0
      %386 = vmatpush1.msra.mxu0 0.0
      %387 = vmatprep.subr.mxu0 0.0
      %388 = vmatpush1.msra.mxu0 0.0
      %389 = vmatprep.subr.mxu0 0.0
      %390 = vmatpush1.msra.mxu0 0.0
      %391 = vmatprep.subr.mxu0 0.0
      %392 = vmatpush1.msra.mxu0 0.0
      %393 = vmatprep.subr.mxu0 0.0
      %394 = vmatpush1.msra.mxu0 0.0
      %395 = vmatprep.subr.mxu0 0.0
      %396 = vmatpush1.msra.mxu0 0.0
      %397 = vmatprep.subr.mxu0 0.0
      %398 = vmatpush1.msra.mxu0 0.0
      %399 = vmatprep.subr.mxu0 0.0
      %400 = vmatpush1.msra.mxu0 0.0
      %401 = vmatprep.subr.mxu0 0.0
      %402 = vmatpush1.msra.mxu0 0.0
      %403 = vmatprep.subr.mxu0 0.0
      %404 = vmatpush1.msra.mxu0 0.0
      %405 = vmatprep.subr.mxu0 0.0
      %406 = vmatpush1.msra.mxu0 0.0
      %407 = vmatprep.subr.mxu0 0.0
      %408 = vmatpush1.msra.mxu0 0.0
      %409 = vmatprep.subr.mxu0 0.0
      %410 = vmatpush1.msra.mxu0 %v377
      %411 = vmatprep.subr.mxu0 0.0
      %412 = vmatpush2.msra.mxu0 0.0
      %413 = vmatprep.subr.mxu0 0.0
      %414 = vmatpush2.msra.mxu0 0.0
      %415 = vmatprep.subr.mxu0 0.0
      %416 = vmatpush2.msra.mxu0 0.0
      %417 = vmatprep.subr.mxu0 0.0
      %418 = vmatpush2.msra.mxu0 0.0
      %419 = vmatprep.subr.mxu0 0.0
      %420 = vmatpush2.msra.mxu0 0.0
      %421 = vmatprep.subr.mxu0 0.0
      %422 = vmatpush2.msra.mxu0 0.0
      %423 = vmatprep.subr.mxu0 0.0
      %424 = vmatpush2.msra.mxu0 0.0
      %425 = vmatprep.subr.mxu0 0.0
      %426 = vmatpush2.msra.mxu0 0.0
      %427 = vmatprep.subr.mxu0 0.0
      %428 = vmatpush2.msra.mxu0 0.0
      %429 = vmatprep.subr.mxu0 0.0
      %430 = vmatpush2.msra.mxu0 0.0
      %431 = vmatprep.subr.mxu0 0.0
      %432 = vmatpush2.msra.mxu0 0.0
      %433 = vmatprep.subr.mxu0 0.0
      %434 = vmatpush2.msra.mxu0 0.0
      %435 = vmatprep.subr.mxu0 0.0
      %436 = vmatpush2.msra.mxu0 0.0
      %437 = vmatprep.subr.mxu0 0.0
      %438 = vmatpush2.msra.mxu0 0.0
      %439 = vmatprep.subr.mxu0 0.0
      %440 = vmatpush2.msra.mxu0 0.0
      %441 = vmatprep.subr.mxu0 0.0
      %442 = vmatpush2.msra.mxu0 0.0
      %443 = vmatprep.mubr.f32.mxu0 0.0
      %444 = vmatmul.mubr.f32.gmra.mxu0 %v232
      %v445 = vpop.f32.mrf.mxu0
      %v446 = vadd.f32 %v228, %v445
      %v447 = vpop.f32.mrf.mxu0
      %448 = vmatprep.mubr.f32.mxu0 0.0
      %449 = vmatmul.mubr.f32.gmra.mxu0 %v235
      %v450 = vpop.f32.mrf.mxu0
      %v451 = vadd.f32 %v228, %v450
      %v452 = vpop.f32.mrf.mxu0
      %453 = vmatprep.mubr.f32.mxu0 0.0
      %454 = vmatmul.mubr.f32.gmra.mxu0 %v238
      %v455 = vpop.f32.mrf.mxu0
      %v456 = vadd.f32 %v228, %v455
      %v457 = vpop.f32.mrf.mxu0
      %458 = vmatprep.mubr.f32.mxu0 0.0
      %459 = vmatmul.mubr.f32.gmra.mxu0 %v241
      %v460 = vpop.f32.mrf.mxu0
      %v461 = vadd.f32 %v228, %v460
      %v462 = vpop.f32.mrf.mxu0
      %463 = vmatprep.mubr.f32.mxu0 0.0
      %464 = vmatmul.mubr.f32.gmra.mxu0 %v244
      %v465 = vpop.f32.mrf.mxu0
      %v466 = vadd.f32 %v228, %v465
      %v467 = vpop.f32.mrf.mxu0
      %468 = vmatprep.mubr.f32.mxu0 0.0
      %469 = vmatmul.mubr.f32.gmra.mxu0 %v247
      %v470 = vpop.f32.mrf.mxu0
      %v471 = vadd.f32 %v228, %v470
      %v472 = vpop.f32.mrf.mxu0
      %473 = vmatprep.mubr.f32.mxu0 0.0
      %474 = vmatmul.mubr.f32.gmra.mxu0 %v250
      %v475 = vpop.f32.mrf.mxu0
      %v476 = vadd.f32 %v228, %v475
      %v477 = vpop.f32.mrf.mxu0
      %478 = vmatprep.mubr.f32.mxu0 0.0
      %479 = vmatmul.mubr.f32.gmra.mxu0 %v253
      %v480 = vpop.f32.mrf.mxu0
      %v481 = vadd.f32 %v228, %v480
      %v482 = vpop.f32.mrf.mxu0
      %483 = vmatprep.mubr.f32.mxu0 0.0
      %484 = vmatmul.mubr.f32.gmra.mxu0 %v256
      %v485 = vpop.f32.mrf.mxu0
      %v486 = vadd.f32 %v228, %v485
      %v487 = vpop.f32.mrf.mxu0
      %488 = vmatprep.mubr.f32.mxu0 0.0
      %489 = vmatmul.mubr.f32.gmra.mxu0 %v259
      %v490 = vpop.f32.mrf.mxu0
      %v491 = vadd.f32 %v228, %v490
      %v492 = vpop.f32.mrf.mxu0
      %493 = vmatprep.mubr.f32.mxu0 0.0
      %494 = vmatmul.mubr.f32.gmra.mxu0 %v262
      %v495 = vpop.f32.mrf.mxu0
      %v496 = vadd.f32 %v228, %v495
      %v497 = vpop.f32.mrf.mxu0
      %498 = vmatprep.mubr.f32.mxu0 0.0
      %499 = vmatmul.mubr.f32.gmra.mxu0 %v265
      %v500 = vpop.f32.mrf.mxu0
      %v501 = vadd.f32 %v228, %v500
      %v502 = vpop.f32.mrf.mxu0
      %503 = vmatprep.mubr.f32.mxu0 0.0
      %504 = vmatmul.mubr.f32.gmra.mxu0 %v268
      %v505 = vpop.f32.mrf.mxu0
      %v506 = vadd.f32 %v228, %v505
      %v507 = vpop.f32.mrf.mxu0
      %508 = vmatprep.mubr.f32.mxu0 0.0
      %509 = vmatmul.mubr.f32.gmra.mxu0 %v271
      %v510 = vpop.f32.mrf.mxu0
      %v511 = vadd.f32 %v228, %v510
      %v512 = vpop.f32.mrf.mxu0
      %513 = vmatprep.mubr.f32.mxu0 0.0
      %514 = vmatmul.mubr.f32.gmra.mxu0 %v274
      %v515 = vpop.f32.mrf.mxu0
      %v516 = vadd.f32 %v228, %v515
      %v517 = vpop.f32.mrf.mxu0
      %518 = vmatprep.mubr.f32.mxu0 0.0
      %519 = vmatmul.mubr.f32.gmra.mxu0 %v277
      %v520 = vpop.f32.mrf.mxu0
      %v521 = vadd.f32 %v228, %v520
      %v522 = vpop.f32.mrf.mxu0
      %523 = vmatprep.mubr.f32.mxu0 0.0
      %524 = vmatmul.mubr.f32.gmra.mxu0 %v280
      %v525 = vpop.f32.mrf.mxu0
      %v526 = vadd.f32 %v228, %v525
      %v527 = vpop.f32.mrf.mxu0
      %528 = vmatprep.mubr.f32.mxu0 0.0
      %529 = vmatmul.mubr.f32.gmra.mxu0 %v283
      %v530 = vpop.f32.mrf.mxu0
      %v531 = vadd.f32 %v228, %v530
      %v532 = vpop.f32.mrf.mxu0
      %533 = vmatprep.mubr.f32.mxu0 0.0
      %534 = vmatmul.mubr.f32.gmra.mxu0 %v286
      %v535 = vpop.f32.mrf.mxu0
      %v536 = vadd.f32 %v228, %v535
      %v537 = vpop.f32.mrf.mxu0
      %538 = vmatprep.mubr.f32.mxu0 0.0
      %539 = vmatmul.mubr.f32.gmra.mxu0 %v289
      %v540 = vpop.f32.mrf.mxu0
      %v541 = vadd.f32 %v228, %v540
      %v542 = vpop.f32.mrf.mxu0
      %543 = vmatprep.mubr.f32.mxu0 0.0
      %544 = vmatmul.mubr.f32.gmra.mxu0 %v292
      %v545 = vpop.f32.mrf.mxu0
      %v546 = vadd.f32 %v228, %v545
      %v547 = vpop.f32.mrf.mxu0
      %548 = vmatprep.mubr.f32.mxu0 0.0
      %549 = vmatmul.mubr.f32.gmra.mxu0 %v295
      %v550 = vpop.f32.mrf.mxu0
      %v551 = vadd.f32 %v228, %v550
      %v552 = vpop.f32.mrf.mxu0
      %553 = vmatprep.mubr.f32.mxu0 0.0
      %554 = vmatmul.mubr.f32.gmra.mxu0 %v298
      %v555 = vpop.f32.mrf.mxu0
      %v556 = vadd.f32 %v228, %v555
      %v557 = vpop.f32.mrf.mxu0
      %558 = vmatprep.mubr.f32.mxu0 0.0
      %559 = vmatmul.mubr.f32.gmra.mxu0 %v301
      %v560 = vpop.f32.mrf.mxu0
      %v561 = vadd.f32 %v228, %v560
      %v562 = vpop.f32.mrf.mxu0
      %563 = vmatprep.mubr.f32.mxu0 0.0
      %564 = vmatmul.mubr.f32.gmra.mxu0 %v304
      %v565 = vpop.f32.mrf.mxu0
      %v566 = vadd.f32 %v228, %v565
      %v567 = vpop.f32.mrf.mxu0
      %568 = vmatprep.mubr.f32.mxu0 0.0
      %569 = vmatmul.mubr.f32.gmra.mxu0 %v307
      %v570 = vpop.f32.mrf.mxu0
      %v571 = vadd.f32 %v228, %v570
      %v572 = vpop.f32.mrf.mxu0
      %573 = vmatprep.mubr.f32.mxu0 0.0
      %574 = vmatmul.mubr.f32.gmra.mxu0 %v310
      %v575 = vpop.f32.mrf.mxu0
      %v576 = vadd.f32 %v228, %v575
      %v577 = vpop.f32.mrf.mxu0
      %578 = vmatprep.mubr.f32.mxu0 0.0
      %579 = vmatmul.mubr.f32.gmra.mxu0 %v313
      %v580 = vpop.f32.mrf.mxu0
      %v581 = vadd.f32 %v228, %v580
      %v582 = vpop.f32.mrf.mxu0
      %583 = vmatprep.mubr.f32.mxu0 0.0
      %584 = vmatmul.mubr.f32.gmra.mxu0 %v316
      %v585 = vpop.f32.mrf.mxu0
      %v586 = vadd.f32 %v228, %v585
      %v587 = vpop.f32.mrf.mxu0
      %588 = vmatprep.mubr.f32.mxu0 0.0
      %589 = vmatmul.mubr.f32.gmra.mxu0 %v319
      %v590 = vpop.f32.mrf.mxu0
      %v591 = vadd.f32 %v228, %v590
      %v592 = vpop.f32.mrf.mxu0
      %593 = vmatprep.mubr.f32.mxu0 0.0
      %594 = vmatmul.mubr.f32.gmra.mxu0 %v322
      %v595 = vpop.f32.mrf.mxu0
      %v596 = vadd.f32 %v228, %v595
      %v597 = vpop.f32.mrf.mxu0
      %598 = vmatprep.mubr.f32.mxu0 0.0
      %599 = vmatmul.mubr.f32.gmra.mxu0 %v325
      %v600 = vpop.f32.mrf.mxu0
      %v601 = vadd.f32 %v228, %v600
      %v602 = vpop.f32.mrf.mxu0
      %603 = vmatprep.mubr.f32.mxu0 0.0
      %604 = vmatmul.mubr.f32.gmra.mxu0 %v328
      %v605 = vpop.f32.mrf.mxu0
      %v606 = vadd.f32 %v228, %v605
      %v607 = vpop.f32.mrf.mxu0
      %608 = vmatprep.mubr.f32.mxu0 0.0
      %609 = vmatmul.mubr.f32.gmra.mxu0 %v331
      %v610 = vpop.f32.mrf.mxu0
      %v611 = vadd.f32 %v228, %v610
      %v612 = vpop.f32.mrf.mxu0
      %613 = vmatprep.mubr.f32.mxu0 0.0
      %614 = vmatmul.mubr.f32.gmra.mxu0 %v334
      %v615 = vpop.f32.mrf.mxu0
      %v616 = vadd.f32 %v228, %v615
      %v617 = vpop.f32.mrf.mxu0
      %618 = vmatprep.mubr.f32.mxu0 0.0
      %619 = vmatmul.mubr.f32.gmra.mxu0 %v337
      %v620 = vpop.f32.mrf.mxu0
      %v621 = vadd.f32 %v228, %v620
      %v622 = vpop.f32.mrf.mxu0
      %623 = vmatprep.mubr.f32.mxu0 0.0
      %624 = vmatmul.mubr.f32.gmra.mxu0 %v340
      %v625 = vpop.f32.mrf.mxu0
      %v626 = vadd.f32 %v228, %v625
      %v627 = vpop.f32.mrf.mxu0
      %628 = vmatprep.mubr.f32.mxu0 0.0
      %629 = vmatmul.mubr.f32.gmra.mxu0 %v343
      %v630 = vpop.f32.mrf.mxu0
      %v631 = vadd.f32 %v228, %v630
      %v632 = vpop.f32.mrf.mxu0
      %633 = vmatprep.mubr.f32.mxu0 0.0
      %634 = vmatmul.mubr.f32.gmra.mxu0 %v346
      %v635 = vpop.f32.mrf.mxu0
      %v636 = vadd.f32 %v228, %v635
      %v637 = vpop.f32.mrf.mxu0
      %638 = vmatprep.mubr.f32.mxu0 0.0
      %639 = vmatmul.mubr.f32.gmra.mxu0 %v349
      %v640 = vpop.f32.mrf.mxu0
      %v641 = vadd.f32 %v228, %v640
      %v642 = vpop.f32.mrf.mxu0
      %643 = vmatprep.mubr.f32.mxu0 0.0
      %644 = vmatmul.mubr.f32.gmra.mxu0 %v352
      %v645 = vpop.f32.mrf.mxu0
      %v646 = vadd.f32 %v228, %v645
      %v647 = vpop.f32.mrf.mxu0
      %648 = vmatprep.mubr.f32.mxu0 0.0
      %649 = vmatmul.mubr.f32.gmra.mxu0 %v355
      %v650 = vpop.f32.mrf.mxu0
      %v651 = vadd.f32 %v228, %v650
      %v652 = vpop.f32.mrf.mxu0
      %653 = vmatprep.mubr.f32.mxu0 0.0
      %654 = vmatmul.mubr.f32.gmra.mxu0 %v358
      %v655 = vpop.f32.mrf.mxu0
      %v656 = vadd.f32 %v228, %v655
      %v657 = vpop.f32.mrf.mxu0
      %658 = vmatprep.mubr.f32.mxu0 0.0
      %659 = vmatmul.mubr.f32.gmra.mxu0 %v361
      %v660 = vpop.f32.mrf.mxu0
      %v661 = vadd.f32 %v228, %v660
      %v662 = vpop.f32.mrf.mxu0
      %663 = vmatprep.mubr.f32.mxu0 0.0
      %664 = vmatmul.mubr.f32.gmra.mxu0 %v364
      %v665 = vpop.f32.mrf.mxu0
      %v666 = vadd.f32 %v228, %v665
      %v667 = vpop.f32.mrf.mxu0
      %668 = vmatprep.mubr.f32.mxu0 0.0
      %669 = vmatmul.mubr.f32.gmra.mxu0 %v367
      %v670 = vpop.f32.mrf.mxu0
      %v671 = vadd.f32 %v228, %v670
      %v672 = vpop.f32.mrf.mxu0
      %673 = vmatprep.mubr.f32.mxu0 0.0
      %674 = vmatmul.mubr.f32.gmra.mxu0 %v370
      %v675 = vpop.f32.mrf.mxu0
      %v676 = vadd.f32 %v228, %v675
      %v677 = vpop.f32.mrf.mxu0
      %678 = vmatprep.mubr.f32.mxu0 0.0
      %679 = vmatmul.mubr.f32.gmra.mxu0 %v373
      %v680 = vpop.f32.mrf.mxu0
      %v681 = vadd.f32 %v228, %v680
      %v682 = vpop.f32.mrf.mxu0
      %683 = vdwg.mxu0
      %vm684 = vcmask 130048
      %685 = vst.msk [vmem:[%s172] sm:$0xff] %vm684, %v446
      %686 = vst.msk [vmem:[%s172 + $0x8] sm:$0xff] %vm684, %v451
      %687 = vst.msk [vmem:[%s172 + $0x10] sm:$0xff] %vm684, %v456
      %688 = vst.msk [vmem:[%s172 + $0x18] sm:$0xff] %vm684, %v461
      %689 = vst.msk [vmem:[%s172 + $0x20] sm:$0xff] %vm684, %v466
      %690 = vst.msk [vmem:[%s172 + $0x28] sm:$0xff] %vm684, %v471
      %691 = vst.msk [vmem:[%s172 + $0x30] sm:$0xff] %vm684, %v476
      %692 = vst.msk [vmem:[%s172 + $0x38] sm:$0xff] %vm684, %v481
      %693 = vst.msk [vmem:[%s172 + $0x40] sm:$0xff] %vm684, %v486
      %694 = vst.msk [vmem:[%s172 + $0x48] sm:$0xff] %vm684, %v491
      %695 = vst.msk [vmem:[%s172 + $0x50] sm:$0xff] %vm684, %v496
      %696 = vst.msk [vmem:[%s172 + $0x58] sm:$0xff] %vm684, %v501
      %697 = vst.msk [vmem:[%s172 + $0x60] sm:$0xff] %vm684, %v506
      %698 = vst.msk [vmem:[%s172 + $0x68] sm:$0xff] %vm684, %v511
      %699 = vst.msk [vmem:[%s172 + $0x70] sm:$0xff] %vm684, %v516
      %700 = vst.msk [vmem:[%s172 + $0x78] sm:$0xff] %vm684, %v521
      %701 = vst.msk [vmem:[%s172 + $0x80] sm:$0xff] %vm684, %v526
      %702 = vst.msk [vmem:[%s172 + $0x88] sm:$0xff] %vm684, %v531
      %703 = vst.msk [vmem:[%s172 + $0x90] sm:$0xff] %vm684, %v536
      %704 = vst.msk [vmem:[%s172 + $0x98] sm:$0xff] %vm684, %v541
      %705 = vst.msk [vmem:[%s172 + $0xa0] sm:$0xff] %vm684, %v546
      %706 = vst.msk [vmem:[%s172 + $0xa8] sm:$0xff] %vm684, %v551
      %707 = vst.msk [vmem:[%s172 + $0xb0] sm:$0xff] %vm684, %v556
      %708 = vst.msk [vmem:[%s172 + $0xb8] sm:$0xff] %vm684, %v561
      %709 = vst.msk [vmem:[%s172 + $0xc0] sm:$0xff] %vm684, %v566
      %710 = vst.msk [vmem:[%s172 + $0xc8] sm:$0xff] %vm684, %v571
      %711 = vst.msk [vmem:[%s172 + $0xd0] sm:$0xff] %vm684, %v576
      %712 = vst.msk [vmem:[%s172 + $0xd8] sm:$0xff] %vm684, %v581
      %713 = vst.msk [vmem:[%s172 + $0xe0] sm:$0xff] %vm684, %v586
      %714 = vst.msk [vmem:[%s172 + $0xe8] sm:$0xff] %vm684, %v591
      %715 = vst.msk [vmem:[%s172 + $0xf0] sm:$0xff] %vm684, %v596
      %716 = vst.msk [vmem:[%s172 + $0xf8] sm:$0xff] %vm684, %v601
      %717 = vst.msk [vmem:[%s172 + $0x100] sm:$0xff] %vm684, %v606
      %718 = vst.msk [vmem:[%s172 + $0x108] sm:$0xff] %vm684, %v611
      %719 = vst.msk [vmem:[%s172 + $0x110] sm:$0xff] %vm684, %v616
      %720 = vst.msk [vmem:[%s172 + $0x118] sm:$0xff] %vm684, %v621
      %721 = vst.msk [vmem:[%s172 + $0x120] sm:$0xff] %vm684, %v626
      %722 = vst.msk [vmem:[%s172 + $0x128] sm:$0xff] %vm684, %v631
      %723 = vst.msk [vmem:[%s172 + $0x130] sm:$0xff] %vm684, %v636
      %724 = vst.msk [vmem:[%s172 + $0x138] sm:$0xff] %vm684, %v641
      %725 = vst.msk [vmem:[%s172 + $0x140] sm:$0xff] %vm684, %v646
      %726 = vst.msk [vmem:[%s172 + $0x148] sm:$0xff] %vm684, %v651
      %727 = vst.msk [vmem:[%s172 + $0x150] sm:$0xff] %vm684, %v656
      %728 = vst.msk [vmem:[%s172 + $0x158] sm:$0xff] %vm684, %v661
      %729 = vst.msk [vmem:[%s172 + $0x160] sm:$0xff] %vm684, %v666
      %730 = vst.msk [vmem:[%s172 + $0x168] sm:$0xff] %vm684, %v671
      %731 = vst.msk [vmem:[%s172 + $0x170] sm:$0xff] %vm684, %v676
      %732 = vst.msk [vmem:[%s172 + $0x178] sm:$0xff] %vm684, %v681
      %s733 = smul.u32 48, %s14
      %p734 = scmp.lt.s32.totalorder %s733, 95
      %s735 = scalar_select %p734, %s733, 95
      %s736 = smul.addr %s735, 8
      %s737 = scalar_lea.vmem %s3, %s736
      // Predicated region
      $region33: #{tpu_custom_call.1} parent=31 // pred_check
        %p738 = pneg %p100
      $region34: #{tpu_custom_call.1} parent=31 // pred_check_branch
        %740 = sbr.rel (%p738) target = $region36
      $region35: #{tpu_custom_call.1} parent=31 // pred_region
        %s741 = smul.u32 48, %s14
      $region36: #{tpu_custom_call.1} parent=31 // pred_fallthru
        _
    $region32: #{tpu_custom_call.1} parent=5 // pred_fallthru
      _
    %p742 = scmp.le.s32.totalorder 2, %s9
    // Predicated region
    $region37: #{tpu_custom_call.1} parent=5 // pred_check
      %p743 = pneg %p742
    $region38: #{tpu_custom_call.1} parent=5 // pred_check_branch
      %745 = sbr.rel (%p743) target = $region40
    $region39: #{tpu_custom_call.1} parent=5 // pred_region
      %s746 = ssub.s32 %s9, 2
      // Predicated region
      $region41: #{tpu_custom_call.1} parent=39 // pred_check
        %p747 = pneg %p106
      $region42: #{tpu_custom_call.1} parent=39 // pred_check_branch
        %749 = sbr.rel (%p747) target = $region44
      $region43: #{tpu_custom_call.1} parent=39 // pred_region
        %s750 = smul.u32 48, %s15
        %p751 = scmp.lt.s32.totalorder %s750, 95
        %s752 = scalar_select %p751, %s750, 95
        %s753 = smul.addr %s752, 8
        %s754 = scalar_lea.vmem %s3, %s753
      $region44: #{tpu_custom_call.1} parent=39 // pred_fallthru
        _
    $region40: #{tpu_custom_call.1} parent=5 // pred_fallthru
      _
  $region6: #{tpu_custom_call.1} parent=0 // loop_footer
    %s13 = sadd.s32 1, %s9
  $region7: #{tpu_custom_call.1} parent=0 // loop_footer_branch
    %8 = sbr.rel target = $region3
  $region8: #{tpu_custom_call.1} parent=0 // loop_exit
    _

</llo_original>
